<compile_context>
chip_gen: v6e
topology: v6e:2x2x1
jax: 0.10.0
libtpu: 0.0.40
codegen_flags: <defaults>
</compile_context>

<pallas_src>
import jax
import jax.numpy as jnp
import numpy as np
from jax.experimental import pallas as pl
from jax.experimental.pallas import tpu as pltpu


def node_mlp_kernel(x_ref, w1_ref, b1_ref, w2_ref, b2_ref, out_ref):
    # x_ref: (TILE_N, 3D) bf16 -- (type | attr_sum | depth) already concatenated.
    # One K=3D MXU contraction, f32 accumulation, f32 bias + ReLU.
    h = jnp.dot(x_ref[...], w1_ref[...],
                preferred_element_type=jnp.float32) + b1_ref[...]
    h = jnp.maximum(h, 0.0)
    # Cast to bf16 only immediately before the second dot (keep elementwise f32).
    y = jnp.dot(h.astype(jnp.bfloat16), w2_ref[...],
                preferred_element_type=jnp.float32) + b2_ref[...]
    out_ref[...] = y.astype(out_ref.dtype)


def _round_up(x, m):
    return (x + m - 1) // m * m


def code_enc_dec_get_emb(node_feat, node_depth, params, max_depth, tile_n=256):
    """Mirror of CodeEncDec.get_emb up to (and including) node_mlp.

    node_feat:  int32 [N, 1 + A]   (col 0 = node type, cols 1: = node attrs)
    node_depth: int32 [N]          (upper-clamped to max_depth, as in PyTorch)
    """
    # ---- glue: embedding gathers + masked attribute reduction (plain JAX) ----
    type_idx = node_feat[:, 0]
    attr_idx = node_feat[:, 1:]
    type_emb = jnp.take(params["type_emb"], type_idx, axis=0)            # [N, D]
    attr_sum = (jnp.take(params["attr_emb"], attr_idx, axis=0)
                * (attr_idx > 0)[..., None]).sum(axis=1)                 # [N, D]
    depth = jnp.minimum(node_depth.reshape(-1), max_depth)
    depth_emb = jnp.take(params["depth_emb"], depth, axis=0)             # [N, D]

    # Concatenated activation (hstack order matches reference: type|attr|depth).
    x = jnp.concatenate([type_emb, attr_sum, depth_emb], axis=1)         # [N, 3D]
    x = x.astype(jnp.bfloat16)

    N, three_d = x.shape
    D = three_d // 3

    w1 = params["w1"].astype(jnp.bfloat16)                 # [3D, 2D] (torch W.T)
    b1 = params["b1"].reshape(1, -1).astype(jnp.float32)   # [1, 2D]
    w2 = params["w2"].astype(jnp.bfloat16)                 # [2D, D]
    b2 = params["b2"].reshape(1, -1).astype(jnp.float32)   # [1, D]

    # Pad N up to a multiple of the row tile so every grid step sees a full block.
    tile_n = max(8, min(tile_n, _round_up(N, 8)))
    n_pad = _round_up(N, tile_n)
    if n_pad != N:
        x = jnp.pad(x, ((0, n_pad - N), (0, 0)))
    grid = (n_pad // tile_n,)

    flops = 2 * n_pad * (3 * D) * (2 * D) + 2 * n_pad * (2 * D) * D
    bytes_accessed = (x.size * x.dtype.itemsize
                      + w1.size * 2 + w2.size * 2
                      + b1.size * 4 + b2.size * 4
                      + n_pad * D * 4)  # f32 output writeback

    feat = pl.pallas_call(
        node_mlp_kernel,
        out_shape=jax.ShapeDtypeStruct((n_pad, D), jnp.float32),
        grid=grid,
        in_specs=[
            # Activations: one (tile_n, 3D) block per grid step (pipelined).
            pl.BlockSpec((tile_n, 3 * D), lambda i: (i, 0)),
            # Weights / biases: constant block index -> stay VMEM-resident.
            pl.BlockSpec(w1.shape, lambda i: (0, 0)),
            pl.BlockSpec(b1.shape, lambda i: (0, 0)),
            pl.BlockSpec(w2.shape, lambda i: (0, 0)),
            pl.BlockSpec(b2.shape, lambda i: (0, 0)),
        ],
        out_specs=pl.BlockSpec((tile_n, D), lambda i: (i, 0)),
        compiler_params=pltpu.CompilerParams(
            dimension_semantics=("parallel",),
            vmem_limit_bytes=32 * 1024 * 1024,
        ),
        cost_estimate=pl.CostEstimate(
            flops=flops, transcendentals=0, bytes_accessed=bytes_accessed),
    )(x, w1, b1, w2, b2)

    feat = feat[:N]
    # TODO(synk): self.gnn.get_emb(graph, feat) and the Linear/LSTM decoders are
    # external modules whose definitions are not provided; not translated.
    return feat


def _reference(node_feat, node_depth, params, max_depth):
    """Pure-JAX mirror of get_emb up to node_mlp, using the same mixed precision
    as the kernel (bf16 matmul operands, f32 accumulation / bias / ReLU)."""
    type_emb = jnp.take(params["type_emb"], node_feat[:, 0], axis=0)
    attr_idx = node_feat[:, 1:]
    attr_emb = (jnp.take(params["attr_emb"], attr_idx, axis=0)
                * (attr_idx > 0)[..., None]).sum(axis=1)
    depth = jnp.minimum(node_depth.reshape(-1), max_depth)
    depth_emb = jnp.take(params["depth_emb"], depth, axis=0)
    x = jnp.concatenate([type_emb, attr_emb, depth_emb], axis=1).astype(jnp.bfloat16)
    h = jnp.dot(x, params["w1"].astype(jnp.bfloat16),
                preferred_element_type=jnp.float32) + params["b1"]
    h = jnp.maximum(h, 0.0)
    return jnp.dot(h.astype(jnp.bfloat16), params["w2"].astype(jnp.bfloat16),
                   preferred_element_type=jnp.float32) + params["b2"]


if __name__ == "__main__":
    # Small shapes consistent with the module's __init__:
    N = 512           # number of graph nodes (several row tiles)
    D = 32            # dim_feat
    A = 4             # number of node-attribute slots (feat[:, 1:])
    num_nodetypes = 8
    num_nodeattrs = 10
    max_depth = 5

    key = jax.random.PRNGKey(0)
    keys = jax.random.split(key, 10)

    params = {
        "type_emb":  jax.random.normal(keys[0], (num_nodetypes, D), jnp.float32) * 0.1,
        "attr_emb":  jax.random.normal(keys[1], (num_nodeattrs, D), jnp.float32) * 0.1,
        "depth_emb": jax.random.normal(keys[2], (max_depth + 1, D), jnp.float32) * 0.1,
        "w1": jax.random.normal(keys[3], (3 * D, 2 * D), jnp.float32) * 0.05,
        "b1": jax.random.normal(keys[4], (2 * D,), jnp.float32) * 0.05,
        "w2": jax.random.normal(keys[5], (2 * D, D), jnp.float32) * 0.05,
        "b2": jax.random.normal(keys[6], (D,), jnp.float32) * 0.05,
    }

    # node features: col 0 = node type, cols 1: = attrs (0 means "missing" -> masked)
    type_col = jax.random.randint(keys[7], (N, 1), 0, num_nodetypes)
    attr_cols = jax.random.randint(keys[8], (N, A), 0, num_nodeattrs)  # includes zeros
    node_feat = jnp.concatenate([type_col, attr_cols], axis=1).astype(jnp.int32)
    node_depth = jax.random.randint(keys[9], (N,), 0, max_depth + 3).astype(jnp.int32)

    out = code_enc_dec_get_emb(node_feat, node_depth, params, max_depth, tile_n=128)
    out = jax.block_until_ready(out)

    ref = _reference(node_feat, node_depth, params, max_depth)
    np.testing.assert_allclose(np.asarray(out), np.asarray(ref), rtol=2e-3, atol=2e-3)

    print("KERNEL_OK")
</pallas_src>

<mosaic_0001>
module attributes {stable_mosaic.version = 11 : i64} {
  func.func @node_mlp_kernel(%arg0: i32, %arg1: memref<128x96xbf16, #tpu.memory_space<vmem>>, %arg2: memref<96x64xbf16, #tpu.memory_space<vmem>>, %arg3: memref<1x64xf32, #tpu.memory_space<vmem>>, %arg4: memref<64x32xbf16, #tpu.memory_space<vmem>>, %arg5: memref<1x32xf32, #tpu.memory_space<vmem>>, %arg6: memref<128x32xf32, #tpu.memory_space<vmem>>) attributes {dimension_semantics = [#tpu.dimension_semantics<parallel>], iteration_bounds = array<i64: 4>, scalar_prefetch = 0 : i64, scratch_operands = 0 : i64, tpu.core_type = #tpu.core_type<tc>, window_params = [{transform_indices = @transform_0, window_bounds = array<i64: 128, 96>}, {pipeline_mode = #tpu.pipeline_mode<synchronous>, transform_indices = @transform_1, window_bounds = array<i64: 96, 64>}, {pipeline_mode = #tpu.pipeline_mode<synchronous>, transform_indices = @transform_2, window_bounds = array<i64: 1, 64>}, {pipeline_mode = #tpu.pipeline_mode<synchronous>, transform_indices = @transform_3, window_bounds = array<i64: 64, 32>}, {pipeline_mode = #tpu.pipeline_mode<synchronous>, transform_indices = @transform_4, window_bounds = array<i64: 1, 32>}, {transform_indices = @transform_5, window_bounds = array<i64: 128, 32>}]} {
    %c0 = arith.constant 0 : index
    %c0_0 = arith.constant 0 : index
    %0 = vector.load %arg1[%c0, %c0_0] : memref<128x96xbf16, #tpu.memory_space<vmem>>, vector<128x96xbf16>
    %c0_1 = arith.constant 0 : index
    %c0_2 = arith.constant 0 : index
    %1 = vector.load %arg2[%c0_1, %c0_2] : memref<96x64xbf16, #tpu.memory_space<vmem>>, vector<96x64xbf16>
    %cst = arith.constant dense<0.000000e+00> : vector<128x64xf32>
    %2 = tpu.matmul %0, %1, %cst {dimension_numbers = #tpu.dot_dimension_numbers<[1], [0], [0], [1], [0, 0, 1, 1], [], []>} : vector<128x96xbf16>, vector<96x64xbf16>, vector<128x64xf32> -> vector<128x64xf32>
    %c0_3 = arith.constant 0 : index
    %c0_4 = arith.constant 0 : index
    %3 = vector.load %arg3[%c0_3, %c0_4] : memref<1x64xf32, #tpu.memory_space<vmem>>, vector<1x64xf32>
    %4 = vector.broadcast %3 : vector<1x64xf32> to vector<128x64xf32>
    %5 = arith.addf %2, %4 : vector<128x64xf32>
    %cst_5 = arith.constant 0.000000e+00 : f32
    %6 = vector.broadcast %cst_5 : f32 to vector<128x64xf32>
    %7 = arith.maximumf %5, %6 : vector<128x64xf32>
    %8 = arith.truncf %7 : vector<128x64xf32> to vector<128x64xbf16>
    %c0_6 = arith.constant 0 : index
    %c0_7 = arith.constant 0 : index
    %9 = vector.load %arg4[%c0_6, %c0_7] : memref<64x32xbf16, #tpu.memory_space<vmem>>, vector<64x32xbf16>
    %cst_8 = arith.constant dense<0.000000e+00> : vector<128x32xf32>
    %10 = tpu.matmul %8, %9, %cst_8 {dimension_numbers = #tpu.dot_dimension_numbers<[1], [0], [0], [1], [0, 0, 1, 1], [], []>} : vector<128x64xbf16>, vector<64x32xbf16>, vector<128x32xf32> -> vector<128x32xf32>
    %c0_9 = arith.constant 0 : index
    %c0_10 = arith.constant 0 : index
    %11 = vector.load %arg5[%c0_9, %c0_10] : memref<1x32xf32, #tpu.memory_space<vmem>>, vector<1x32xf32>
    %12 = vector.broadcast %11 : vector<1x32xf32> to vector<128x32xf32>
    %13 = arith.addf %10, %12 : vector<128x32xf32>
    %c0_11 = arith.constant 0 : index
    %c0_12 = arith.constant 0 : index
    %14 = vector.load %arg6[%c0_11, %c0_12] : memref<128x32xf32, #tpu.memory_space<vmem>>, vector<128x32xf32>
    tpu.vector_store %arg6[%c0_11, %c0_12], %13 {strides = array<i32>} : memref<128x32xf32, #tpu.memory_space<vmem>>, vector<128x32xf32>,
    return
  }
  func.func @transform_0(%arg0: i32) -> (i32, i32) {
    %c0_i32 = arith.constant 0 : i32
    %c0_i32_0 = arith.constant 0 : i32
    return %arg0, %c0_i32 : i32, i32
  }
  func.func @transform_1(%arg0: i32) -> (i32, i32) {
    %c0_i32 = arith.constant 0 : i32
    %c0_i32_0 = arith.constant 0 : i32
    %c0_i32_1 = arith.constant 0 : i32
    return %c0_i32, %c0_i32_0 : i32, i32
  }
  func.func @transform_2(%arg0: i32) -> (i32, i32) {
    %c0_i32 = arith.constant 0 : i32
    %c0_i32_0 = arith.constant 0 : i32
    %c0_i32_1 = arith.constant 0 : i32
    return %c0_i32, %c0_i32_0 : i32, i32
  }
  func.func @transform_3(%arg0: i32) -> (i32, i32) {
    %c0_i32 = arith.constant 0 : i32
    %c0_i32_0 = arith.constant 0 : i32
    %c0_i32_1 = arith.constant 0 : i32
    return %c0_i32, %c0_i32_0 : i32, i32
  }
  func.func @transform_4(%arg0: i32) -> (i32, i32) {
    %c0_i32 = arith.constant 0 : i32
    %c0_i32_0 = arith.constant 0 : i32
    %c0_i32_1 = arith.constant 0 : i32
    return %c0_i32, %c0_i32_0 : i32, i32
  }
  func.func @transform_5(%arg0: i32) -> (i32, i32) {
    %c0_i32 = arith.constant 0 : i32
    %c0_i32_0 = arith.constant 0 : i32
    return %arg0, %c0_i32 : i32, i32
  }
}

</mosaic_0001>

<llo_original>
// kernel: tpu_custom_call.1
$region0: #{tpu_custom_call.1}
  #allocation0 [shape = 'u32[]', space=smem, size = 0x4, offset = 0x4, fixed_abs, tag = 'smem constant byte address 0x4 - core index']
  #allocation1 [shape = 'u32[144,128]{1,0:T(1,128)}', space=vmem, size = 0x12000, scoped, tag = 'internal scratch']
  %s0 = inlined_call_operand.vmem [shape: bf16[512,96], index: 0, kind: input, shape index: {}]
  %s1 = inlined_call_operand.vmem [shape: bf16[96,64], index: 1, kind: input, shape index: {}]
  %s2 = inlined_call_operand.vmem [shape: f32[1,64], index: 2, kind: input, shape index: {}]
  %s3 = inlined_call_operand.vmem [shape: bf16[64,32], index: 3, kind: input, shape index: {}]
  %s4 = inlined_call_operand.vmem [shape: f32[1,32], index: 4, kind: input, shape index: {}]
  %s5 = inlined_call_operand.vmem [shape: f32[512,32], index: 5, kind: output, shape index: {}]
  %s6 = sld [smem:[#allocation0]]
  $region53: #{tpu_custom_call.1} parent=0
    _
  %s8 = ssub.s32 1, %s6
  %s9 = scalar_select 0, %s8, %s6
  loop: start=0, step=1, limit=6
  $region2: #{tpu_custom_call.1} parent=0 // loop_pre_header
    _
  $region3: #{tpu_custom_call.1} parent=0 // loop_header
    %s11 = sphi 0, %s15
    %p12 = scmp.ge.s32.totalorder %s11, 6
    %s21 = sphi 0, %s23
    %s24 = sphi 0, %s21
    %s25 = sphi 0, %s24
    %s41 = sphi 0, %s25
    %s45 = sphi 0, %s45
    %s47 = sphi 0, %s45
    %s48 = sphi 0, %s47
    %s62 = sphi 0, %s48
    %s66 = sphi 0, %s66
    %s68 = sphi 0, %s66
    %s69 = sphi 0, %s68
    %s83 = sphi 0, %s69
    %s87 = sphi 0, %s87
    %s89 = sphi 0, %s87
    %s90 = sphi 0, %s89
    %s104 = sphi 0, %s90
    %s108 = sphi 0, %s108
    %s110 = sphi 0, %s108
    %s111 = sphi 0, %s110
    %s125 = sphi 0, %s111
    %s131 = sphi 0, %s133
    %s134 = sphi 0, %s131
    %s135 = sphi 0, %s134
    %s151 = sphi 0, %s135
  $region4: #{tpu_custom_call.1} parent=0 // loop_header_branch
    %14 = sbr.rel (%p12) target = $region8
  $region5: #{tpu_custom_call.1} parent=0 // loop_body
    %s16 = ssub.s32 %s11, 1
    %s17 = ssub.s32 %s11, 2
    %s18 = sadd.s32 %s11, 1
    %s19 = ssub.s32 %s11, %s18
    %p20 = scmp.eq.s32.totalorder %s19, 0
    %s22 = sadd.s32 %s21, 1
    %s23 = scalar_select %p20, %s21, %s22
    %p26 = pneg %p20
    %p27 = scmp.eq.s32.totalorder %s11, 3
    %p28 = por %p26, %p27
    %p29 = scmp.ne.s32.totalorder %s21, %s24
    %p30 = scmp.eq.s32.totalorder %s11, 0
    %p31 = por %p29, %p30
    %p32 = scmp.ne.s32.totalorder %s21, %s24
    %p33 = scmp.eq.s32.totalorder %s16, 3
    %p34 = por %p32, %p33
    %p35 = scmp.ne.s32.totalorder %s24, %s25
    %p36 = scmp.eq.s32.totalorder %s16, 0
    %p37 = por %p35, %p36
    %p38 = scmp.ne.s32.totalorder %s24, %s25
    %p39 = scmp.eq.s32.totalorder %s17, 3
    %p40 = por %p38, %p39
    %p42 = scmp.ne.s32.totalorder %s25, %s41
    %p43 = scmp.eq.s32.totalorder %s17, 0
    %p44 = por %p42, %p43
    %s46 = sadd.s32 %s45, 1
    %p49 = scmp.eq.s32.totalorder %s11, 3
    %p50 = scmp.ne.s32.totalorder %s45, %s47
    %p51 = scmp.eq.s32.totalorder %s11, 0
    %p52 = por %p50, %p51
    %p53 = scmp.ne.s32.totalorder %s45, %s47
    %p54 = scmp.eq.s32.totalorder %s16, 3
    %p55 = por %p53, %p54
    %p56 = scmp.ne.s32.totalorder %s47, %s48
    %p57 = scmp.eq.s32.totalorder %s16, 0
    %p58 = por %p56, %p57
    %p59 = scmp.ne.s32.totalorder %s47, %s48
    %p60 = scmp.eq.s32.totalorder %s17, 3
    %p61 = por %p59, %p60
    %p63 = scmp.ne.s32.totalorder %s48, %s62
    %p64 = scmp.eq.s32.totalorder %s17, 0
    %p65 = por %p63, %p64
    %s67 = sadd.s32 %s66, 1
    %p70 = scmp.eq.s32.totalorder %s11, 3
    %p71 = scmp.ne.s32.totalorder %s66, %s68
    %p72 = scmp.eq.s32.totalorder %s11, 0
    %p73 = por %p71, %p72
    %p74 = scmp.ne.s32.totalorder %s66, %s68
    %p75 = scmp.eq.s32.totalorder %s16, 3
    %p76 = por %p74, %p75
    %p77 = scmp.ne.s32.totalorder %s68, %s69
    %p78 = scmp.eq.s32.totalorder %s16, 0
    %p79 = por %p77, %p78
    %p80 = scmp.ne.s32.totalorder %s68, %s69
    %p81 = scmp.eq.s32.totalorder %s17, 3
    %p82 = por %p80, %p81
    %p84 = scmp.ne.s32.totalorder %s69, %s83
    %p85 = scmp.eq.s32.totalorder %s17, 0
    %p86 = por %p84, %p85
    %s88 = sadd.s32 %s87, 1
    %p91 = scmp.eq.s32.totalorder %s11, 3
    %p92 = scmp.ne.s32.totalorder %s87, %s89
    %p93 = scmp.eq.s32.totalorder %s11, 0
    %p94 = por %p92, %p93
    %p95 = scmp.ne.s32.totalorder %s87, %s89
    %p96 = scmp.eq.s32.totalorder %s16, 3
    %p97 = por %p95, %p96
    %p98 = scmp.ne.s32.totalorder %s89, %s90
    %p99 = scmp.eq.s32.totalorder %s16, 0
    %p100 = por %p98, %p99
    %p101 = scmp.ne.s32.totalorder %s89, %s90
    %p102 = scmp.eq.s32.totalorder %s17, 3
    %p103 = por %p101, %p102
    %p105 = scmp.ne.s32.totalorder %s90, %s104
    %p106 = scmp.eq.s32.totalorder %s17, 0
    %p107 = por %p105, %p106
    %s109 = sadd.s32 %s108, 1
    %p112 = scmp.eq.s32.totalorder %s11, 3
    %p113 = scmp.ne.s32.totalorder %s108, %s110
    %p114 = scmp.eq.s32.totalorder %s11, 0
    %p115 = por %p113, %p114
    %p116 = scmp.ne.s32.totalorder %s108, %s110
    %p117 = scmp.eq.s32.totalorder %s16, 3
    %p118 = por %p116, %p117
    %p119 = scmp.ne.s32.totalorder %s110, %s111
    %p120 = scmp.eq.s32.totalorder %s16, 0
    %p121 = por %p119, %p120
    %p122 = scmp.ne.s32.totalorder %s110, %s111
    %p123 = scmp.eq.s32.totalorder %s17, 3
    %p124 = por %p122, %p123
    %p126 = scmp.ne.s32.totalorder %s111, %s125
    %p127 = scmp.eq.s32.totalorder %s17, 0
    %p128 = por %p126, %p127
    %s129 = ssub.s32 %s11, %s18
    %p130 = scmp.eq.s32.totalorder %s129, 0
    %s132 = sadd.s32 %s131, 1
    %s133 = scalar_select %p130, %s131, %s132
    %p136 = pneg %p130
    %p137 = scmp.eq.s32.totalorder %s11, 3
    %p138 = por %p136, %p137
    %p139 = scmp.ne.s32.totalorder %s131, %s134
    %p140 = scmp.eq.s32.totalorder %s11, 0
    %p141 = por %p139, %p140
    %p142 = scmp.ne.s32.totalorder %s131, %s134
    %p143 = scmp.eq.s32.totalorder %s16, 3
    %p144 = por %p142, %p143
    %p145 = scmp.ne.s32.totalorder %s134, %s135
    %p146 = scmp.eq.s32.totalorder %s16, 0
    %p147 = por %p145, %p146
    %p148 = scmp.ne.s32.totalorder %s134, %s135
    %p149 = scmp.eq.s32.totalorder %s17, 3
    %p150 = por %p148, %p149
    %p152 = scmp.ne.s32.totalorder %s135, %s151
    %p153 = scmp.eq.s32.totalorder %s17, 0
    %p154 = por %p152, %p153
    %p155 = scmp.le.s32.totalorder 1, %s11
    %p156 = scmp.lt.s32.totalorder %s11, 5
    %p157 = pnand %p155, %p156
    %p158 = pneg %p157
    // Predicated region
    $region9: #{tpu_custom_call.1} parent=5 // pred_check
      _
    $region10: #{tpu_custom_call.1} parent=5 // pred_check_branch
      %160 = sbr.rel (%p157) target = $region12
    $region11: #{tpu_custom_call.1} parent=5 // pred_region
      %s161 = ssub.s32 %s11, 1
      // Predicated region
      $region13: #{tpu_custom_call.1} parent=11 // pred_check
        %p162 = pneg %p58
      $region14: #{tpu_custom_call.1} parent=11 // pred_check_branch
        %164 = sbr.rel (%p162) target = $region16
      $region15: #{tpu_custom_call.1} parent=11 // pred_region
        _
      $region16: #{tpu_custom_call.1} parent=11 // pred_fallthru
        _
      // Predicated region
      $region17: #{tpu_custom_call.1} parent=11 // pred_check
        %p165 = pneg %p79
      $region18: #{tpu_custom_call.1} parent=11 // pred_check_branch
        %167 = sbr.rel (%p165) target = $region20
      $region19: #{tpu_custom_call.1} parent=11 // pred_region
        _
      $region20: #{tpu_custom_call.1} parent=11 // pred_fallthru
        _
      // Predicated region
      $region21: #{tpu_custom_call.1} parent=11 // pred_check
        %p168 = pneg %p100
      $region22: #{tpu_custom_call.1} parent=11 // pred_check_branch
        %170 = sbr.rel (%p168) target = $region24
      $region23: #{tpu_custom_call.1} parent=11 // pred_region
        _
      $region24: #{tpu_custom_call.1} parent=11 // pred_fallthru
        _
      // Predicated region
      $region25: #{tpu_custom_call.1} parent=11 // pred_check
        %p171 = pneg %p121
      $region26: #{tpu_custom_call.1} parent=11 // pred_check_branch
        %173 = sbr.rel (%p171) target = $region28
      $region27: #{tpu_custom_call.1} parent=11 // pred_region
        _
      $region28: #{tpu_custom_call.1} parent=11 // pred_fallthru
        _
    $region12: #{tpu_custom_call.1} parent=5 // pred_fallthru
      _
    %p174 = scmp.lt.s32.totalorder %s11, 4
    // Predicated region
    $region29: #{tpu_custom_call.1} parent=5 // pred_check
      %p175 = pneg %p174
    $region30: #{tpu_custom_call.1} parent=5 // pred_check_branch
      %177 = sbr.rel (%p175) target = $region32
    $region31: #{tpu_custom_call.1} parent=5 // pred_region
      // Predicated region
      $region33: #{tpu_custom_call.1} parent=31 // pred_check
        %p178 = pneg %p31
      $region34: #{tpu_custom_call.1} parent=31 // pred_check_branch
        %180 = sbr.rel (%p178) target = $region36
      $region35: #{tpu_custom_call.1} parent=31 // pred_region
        %s181 = smul.u32 16, %s11
        %p182 = scmp.lt.s32.totalorder %s181, 63
        %s183 = scalar_select %p182, %s181, 63
        %s184 = smul.addr %s183, 4
        %s185 = scalar_lea.vmem %s0, %s184
        %s186 = smul.u32 16, %s11
      $region36: #{tpu_custom_call.1} parent=31 // pred_fallthru
        _
    $region32: #{tpu_custom_call.1} parent=5 // pred_fallthru
      _
    %p187 = scmp.le.s32.totalorder 1, %s11
    %p188 = scmp.lt.s32.totalorder %s11, 5
    %p189 = pnand %p187, %p188
    %p190 = pneg %p189
    // Predicated region
    $region37: #{tpu_custom_call.1} parent=5 // pred_check
      _
    $region38: #{tpu_custom_call.1} parent=5 // pred_check_branch
      %192 = sbr.rel (%p189) target = $region40
    $region39: #{tpu_custom_call.1} parent=5 // pred_region
      %s193 = ssub.s32 %s11, 1
      %s194 = smul.u32 16, %s16
      %p195 = scmp.lt.s32.totalorder %s194, 63
      %s196 = scalar_select %p195, %s194, 63
      %s197 = smul.addr %s196, 4
      %s198 = scalar_lea.vmem %s0, %s197
      %p199 = pneg %p37
      %p200 = pneg %p34
      %p201 = pneg %p58
      %p202 = pneg %p55
      %p203 = pneg %p79
      %p204 = pneg %p76
      %p205 = pneg %p100
      %p206 = pneg %p97
      %p207 = pneg %p121
      %p208 = pneg %p118
      %p209 = pneg %p147
      %p210 = pneg %p144
      %s211 = smul.u32 16, %s16
      %p212 = scmp.lt.s32.totalorder %s211, 63
      %s213 = scalar_select %p212, %s211, 63
      %s214 = smul.addr %s213, 8
      %s215 = scalar_lea.vmem %s5, %s214
      %s216 = smul.u32 16, %s16
      %p217 = scmp.lt.s32.totalorder %s216, 63
      %s218 = scalar_select %p217, %s216, 63
      %s219 = smul.addr %s218, 4
      %s220 = scalar_lea.vmem %s0, %s219
      %s221 = smul.u32 16, %s16
      %s222 = smul.u32 16, %s16
      %p223 = scmp.lt.s32.totalorder %s222, 63
      %s224 = scalar_select %p223, %s222, 63
      %s225 = smul.addr %s224, 8
      %s226 = scalar_lea.vmem %s5, %s225
      %s227 = smul.u32 16, %s16
      %v229 = vld [vmem:[%s220] sm:$0xf]
      %v230 = vld [vmem:[%s220 + $0x4] sm:$0xf]
      %v231 = vld [vmem:[%s220 + $0x8] sm:$0xf]
      %v232 = vld [vmem:[%s220 + $0xc] sm:$0xf]
      %v233 = vld [vmem:[%s220 + $0x10] sm:$0xf]
      %v234 = vld [vmem:[%s220 + $0x14] sm:$0xf]
      %v235 = vld [vmem:[%s220 + $0x18] sm:$0xf]
      %v236 = vld [vmem:[%s220 + $0x1c] sm:$0xf]
      %v237 = vld [vmem:[%s220 + $0x20] sm:$0xf]
      %v238 = vld [vmem:[%s220 + $0x24] sm:$0xf]
      %v239 = vld [vmem:[%s220 + $0x28] sm:$0xf]
      %v240 = vld [vmem:[%s220 + $0x2c] sm:$0xf]
      %v241 = vld [vmem:[%s220 + $0x30] sm:$0xf]
      %v242 = vld [vmem:[%s220 + $0x34] sm:$0xf]
      %v243 = vld [vmem:[%s220 + $0x38] sm:$0xf]
      %v244 = vld [vmem:[%s220 + $0x3c] sm:$0xf]
      %v245 = vld [vmem:[%s1] sm:$0xf]
      %v246 = vld [vmem:[%s1 + $0x4] sm:$0xf]
      %v247 = vld [vmem:[%s1 + $0x8] sm:$0xf]
      %v248 = vld [vmem:[%s1 + $0xc] sm:$0xf]
      %v249 = vld [vmem:[%s1 + $0x10] sm:$0xf]
      %v250 = vld [vmem:[%s1 + $0x14] sm:$0xf]
      %v251 = vld [vmem:[%s1 + $0x18] sm:$0xf]
      %v252 = vld [vmem:[%s1 + $0x1c] sm:$0xf]
      %v253 = vld [vmem:[%s1 + $0x20] sm:$0xf]
      %v254 = vld [vmem:[%s1 + $0x24] sm:$0xf]
      %v255 = vld [vmem:[%s1 + $0x28] sm:$0xf]
      %v256 = vld [vmem:[%s1 + $0x2c] sm:$0xf]
      %v257 = vld [vmem:[%s2] sm:$0x1]
      %v259 = vlaneseq
      %v260 = vshrl.u32 %v259, 7
      %v261 = vsub.s32 0, %v260
      %v262 = vrot.slane %v257, %v261
      %v280 = vunpack.c.l.b16 %v229
      %v281 = vunpack.c.l.b16 %v230
      %v282 = vunpack.c.l.b16 %v231
      %v283 = vunpack.c.l.b16 %v232
      %v284 = vunpack.c.l.b16 %v233
      %v285 = vunpack.c.l.b16 %v234
      %v286 = vunpack.c.l.b16 %v235
      %v287 = vunpack.c.l.b16 %v236
      %v288 = vunpack.c.l.b16 %v237
      %v289 = vunpack.c.l.b16 %v238
      %v290 = vunpack.c.l.b16 %v239
      %v291 = vunpack.c.l.b16 %v240
      %v292 = vunpack.c.l.b16 %v241
      %v293 = vunpack.c.l.b16 %v242
      %v294 = vunpack.c.l.b16 %v243
      %v295 = vunpack.c.l.b16 %v244
      %v296 = vpack.c.b16 %v281, %v280
      %v297 = vpack.c.b16 %v283, %v282
      %v298 = vpack.c.b16 %v285, %v284
      %v299 = vpack.c.b16 %v287, %v286
      %v300 = vpack.c.b16 %v289, %v288
      %v301 = vpack.c.b16 %v291, %v290
      %v302 = vpack.c.b16 %v293, %v292
      %v303 = vpack.c.b16 %v295, %v294
      %v316 = vunpack.c.l.b16 %v245
      %v317 = vunpack.c.l.b16 %v246
      %v318 = vunpack.c.l.b16 %v247
      %v319 = vunpack.c.l.b16 %v248
      %v320 = vunpack.c.l.b16 %v249
      %v321 = vunpack.c.l.b16 %v250
      %v322 = vunpack.c.l.b16 %v251
      %v323 = vunpack.c.l.b16 %v252
      %v324 = vunpack.c.l.b16 %v253
      %v325 = vunpack.c.l.b16 %v254
      %v326 = vunpack.c.l.b16 %v255
      %v327 = vunpack.c.l.b16 %v256
      %v328 = vpack.c.b16 %v317, %v316
      %v329 = vpack.c.b16 %v319, %v318
      %v330 = vpack.c.b16 %v321, %v320
      %v331 = vpack.c.b16 %v323, %v322
      %v332 = vpack.c.b16 %v325, %v324
      %v333 = vpack.c.b16 %v327, %v326
      %vm340 = vcmask 785408
      %v342 = vsel %vm340, %v296, 0
      %v345 = vsel %vm340, %v297, 0
      %v348 = vsel %vm340, %v298, 0
      %v351 = vsel %vm340, %v299, 0
      %v354 = vsel %vm340, %v300, 0
      %v357 = vsel %vm340, %v301, 0
      %v360 = vsel %vm340, %v302, 0
      %v363 = vsel %vm340, %v303, 0
      %365 = vmatprep.subr.bf16.mxu0 0
      %366 = vmatpush1.bf16.msra.mxu0 0
      %367 = vmatprep.subr.bf16.mxu0 0
      %368 = vmatpush1.bf16.msra.mxu0 0
      %369 = vmatprep.subr.bf16.mxu0 0
      %370 = vmatpush1.bf16.msra.mxu0 %v333
      %371 = vmatprep.subr.bf16.mxu0 0
      %372 = vmatpush1.bf16.msra.mxu0 %v332
      %373 = vmatprep.subr.bf16.mxu0 0
      %374 = vmatpush1.bf16.msra.mxu0 %v331
      %375 = vmatprep.subr.bf16.mxu0 0
      %376 = vmatpush1.bf16.msra.mxu0 %v330
      %377 = vmatprep.subr.bf16.mxu0 0
      %378 = vmatpush1.bf16.msra.mxu0 %v329
      %379 = vmatprep.subr.bf16.mxu0 0
      %380 = vmatpush1.bf16.msra.mxu0 %v328
      %381 = vmatprep.subr.bf16.mxu0 0
      %382 = vmatpush2.bf16.msra.mxu0 0
      %383 = vmatprep.subr.bf16.mxu0 0
      %384 = vmatpush2.bf16.msra.mxu0 0
      %385 = vmatprep.subr.bf16.mxu0 0
      %386 = vmatpush2.bf16.msra.mxu0 0
      %387 = vmatprep.subr.bf16.mxu0 0
      %388 = vmatpush2.bf16.msra.mxu0 0
      %389 = vmatprep.subr.bf16.mxu0 0
      %390 = vmatpush2.bf16.msra.mxu0 0
      %391 = vmatprep.subr.bf16.mxu0 0
      %392 = vmatpush2.bf16.msra.mxu0 0
      %393 = vmatprep.subr.bf16.mxu0 0
      %394 = vmatpush2.bf16.msra.mxu0 0
      %395 = vmatprep.subr.bf16.mxu0 0
      %396 = vmatpush2.bf16.msra.mxu0 0
      %397 = vmatprep.mubr.bf16.mxu0 0
      %398 = vmatmul.mubr.bf16.gmra.mxu0 %v342
      %v399 = vpop.f32.mrf.mxu0
      %v400 = vadd.f32 %v262, %v399
      %v401 = vpop.f32.mrf.mxu0
      %v402 = vpop.f32.mrf.mxu0
      %v403 = vadd.f32 %v262, %v402
      %v404 = vpop.f32.mrf.mxu0
      %405 = vmatprep.mubr.bf16.mxu0 0
      %406 = vmatmul.mubr.bf16.gmra.mxu0 %v345
      %v407 = vpop.f32.mrf.mxu0
      %v408 = vadd.f32 %v262, %v407
      %v409 = vpop.f32.mrf.mxu0
      %v410 = vpop.f32.mrf.mxu0
      %v411 = vadd.f32 %v262, %v410
      %v412 = vpop.f32.mrf.mxu0
      %413 = vmatprep.mubr.bf16.mxu0 0
      %414 = vmatmul.mubr.bf16.gmra.mxu0 %v348
      %v415 = vpop.f32.mrf.mxu0
      %v416 = vadd.f32 %v262, %v415
      %v417 = vpop.f32.mrf.mxu0
      %v418 = vpop.f32.mrf.mxu0
      %v419 = vadd.f32 %v262, %v418
      %v420 = vpop.f32.mrf.mxu0
      %421 = vmatprep.mubr.bf16.mxu0 0
      %422 = vmatmul.mubr.bf16.gmra.mxu0 %v351
      %v423 = vpop.f32.mrf.mxu0
      %v424 = vadd.f32 %v262, %v423
      %v425 = vpop.f32.mrf.mxu0
      %v426 = vpop.f32.mrf.mxu0
      %v427 = vadd.f32 %v262, %v426
      %v428 = vpop.f32.mrf.mxu0
      %429 = vmatprep.mubr.bf16.mxu0 0
      %430 = vmatmul.mubr.bf16.gmra.mxu0 %v354
      %v431 = vpop.f32.mrf.mxu0
      %v432 = vadd.f32 %v262, %v431
      %v433 = vpop.f32.mrf.mxu0
      %v434 = vpop.f32.mrf.mxu0
      %v435 = vadd.f32 %v262, %v434
      %v436 = vpop.f32.mrf.mxu0
      %437 = vmatprep.mubr.bf16.mxu0 0
      %438 = vmatmul.mubr.bf16.gmra.mxu0 %v357
      %v439 = vpop.f32.mrf.mxu0
      %v440 = vadd.f32 %v262, %v439
      %v441 = vpop.f32.mrf.mxu0
      %v442 = vpop.f32.mrf.mxu0
      %v443 = vadd.f32 %v262, %v442
      %v444 = vpop.f32.mrf.mxu0
      %445 = vmatprep.mubr.bf16.mxu0 0
      %446 = vmatmul.mubr.bf16.gmra.mxu0 %v360
      %v447 = vpop.f32.mrf.mxu0
      %v448 = vadd.f32 %v262, %v447
      %v449 = vpop.f32.mrf.mxu0
      %v450 = vpop.f32.mrf.mxu0
      %v451 = vadd.f32 %v262, %v450
      %v452 = vpop.f32.mrf.mxu0
      %453 = vmatprep.mubr.bf16.mxu0 0
      %454 = vmatmul.mubr.bf16.gmra.mxu0 %v363
      %v455 = vpop.f32.mrf.mxu0
      %v456 = vadd.f32 %v262, %v455
      %v457 = vpop.f32.mrf.mxu0
      %v458 = vpop.f32.mrf.mxu0
      %v459 = vadd.f32 %v262, %v458
      %v460 = vpop.f32.mrf.mxu0
      %461 = vdwg.mxu0
      %v462 = vmax.f32 %v400, 0.0
      %v463 = vmax.f32 %v403, 0.0
      %v464 = vmax.f32 %v408, 0.0
      %v465 = vmax.f32 %v411, 0.0
      %v466 = vmax.f32 %v416, 0.0
      %v467 = vmax.f32 %v419, 0.0
      %v468 = vmax.f32 %v424, 0.0
      %v469 = vmax.f32 %v427, 0.0
      %v470 = vmax.f32 %v432, 0.0
      %v471 = vmax.f32 %v435, 0.0
      %v472 = vmax.f32 %v440, 0.0
      %v473 = vmax.f32 %v443, 0.0
      %v474 = vmax.f32 %v448, 0.0
      %v475 = vmax.f32 %v451, 0.0
      %v476 = vmax.f32 %v456, 0.0
      %v477 = vmax.f32 %v459, 0.0
      %v478 = vpack.c.bf16 %v463, %v462
      %v479 = vpack.c.bf16 %v465, %v464
      %v480 = vpack.c.bf16 %v467, %v466
      %v481 = vpack.c.bf16 %v469, %v468
      %v482 = vpack.c.bf16 %v471, %v470
      %v483 = vpack.c.bf16 %v473, %v472
      %v484 = vpack.c.bf16 %v475, %v474
      %v485 = vpack.c.bf16 %v477, %v476
      %v486 = vld [vmem:[%s3] sm:$0xf]
      %v487 = vld [vmem:[%s3 + $0x4] sm:$0xf]
      %v488 = vld [vmem:[%s3 + $0x8] sm:$0xf]
      %v489 = vld [vmem:[%s3 + $0xc] sm:$0xf]
      %v490 = vld [vmem:[%s3 + $0x10] sm:$0xf]
      %v491 = vld [vmem:[%s3 + $0x14] sm:$0xf]
      %v492 = vld [vmem:[%s3 + $0x18] sm:$0xf]
      %v493 = vld [vmem:[%s3 + $0x1c] sm:$0xf]
      %v494 = vld [vmem:[%s4] sm:$0x1]
      %v496 = vlaneseq
      %v497 = vshrl.u32 %v496, 7
      %v498 = vsub.s32 0, %v497
      %v499 = vrot.slane %v494, %v498
      %v509 = vunpack.c.l.b16 %v486
      %v510 = vunpack.c.l.b16 %v487
      %v511 = vunpack.c.l.b16 %v488
      %v512 = vunpack.c.l.b16 %v489
      %v513 = vunpack.c.l.b16 %v490
      %v514 = vunpack.c.l.b16 %v491
      %v515 = vunpack.c.l.b16 %v492
      %v516 = vunpack.c.l.b16 %v493
      %v517 = vpack.c.b16 %v510, %v509
      %v518 = vpack.c.b16 %v512, %v511
      %v519 = vpack.c.b16 %v514, %v513
      %v520 = vpack.c.b16 %v516, %v515
      %vm525 = vcmask 523264
      %v527 = vsel %vm525, %v478, 0
      %v530 = vsel %vm525, %v479, 0
      %v533 = vsel %vm525, %v480, 0
      %v536 = vsel %vm525, %v481, 0
      %v539 = vsel %vm525, %v482, 0
      %v542 = vsel %vm525, %v483, 0
      %v545 = vsel %vm525, %v484, 0
      %v548 = vsel %vm525, %v485, 0
      %550 = vmatprep.subr.bf16.mxu0 0
      %551 = vmatpush1.bf16.msra.mxu0 0
      %552 = vmatprep.subr.bf16.mxu0 0
      %553 = vmatpush1.bf16.msra.mxu0 0
      %554 = vmatprep.subr.bf16.mxu0 0
      %555 = vmatpush1.bf16.msra.mxu0 0
      %556 = vmatprep.subr.bf16.mxu0 0
      %557 = vmatpush1.bf16.msra.mxu0 0
      %558 = vmatprep.subr.bf16.mxu0 0
      %559 = vmatpush1.bf16.msra.mxu0 %v520
      %560 = vmatprep.subr.bf16.mxu0 0
      %561 = vmatpush1.bf16.msra.mxu0 %v519
      %562 = vmatprep.subr.bf16.mxu0 0
      %563 = vmatpush1.bf16.msra.mxu0 %v518
      %564 = vmatprep.subr.bf16.mxu0 0
      %565 = vmatpush1.bf16.msra.mxu0 %v517
      %566 = vmatprep.subr.bf16.mxu0 0
      %567 = vmatpush2.bf16.msra.mxu0 0
      %568 = vmatprep.subr.bf16.mxu0 0
      %569 = vmatpush2.bf16.msra.mxu0 0
      %570 = vmatprep.subr.bf16.mxu0 0
      %571 = vmatpush2.bf16.msra.mxu0 0
      %572 = vmatprep.subr.bf16.mxu0 0
      %573 = vmatpush2.bf16.msra.mxu0 0
      %574 = vmatprep.subr.bf16.mxu0 0
      %575 = vmatpush2.bf16.msra.mxu0 0
      %576 = vmatprep.subr.bf16.mxu0 0
      %577 = vmatpush2.bf16.msra.mxu0 0
      %578 = vmatprep.subr.bf16.mxu0 0
      %579 = vmatpush2.bf16.msra.mxu0 0
      %580 = vmatprep.subr.bf16.mxu0 0
      %581 = vmatpush2.bf16.msra.mxu0 0
      %582 = vmatprep.mubr.bf16.mxu0 0
      %583 = vmatmul.mubr.bf16.gmra.mxu0 %v527
      %v584 = vpop.f32.mrf.mxu0
      %v585 = vadd.f32 %v499, %v584
      %v586 = vpop.f32.mrf.mxu0
      %v587 = vpop.f32.mrf.mxu0
      %v588 = vadd.f32 %v499, %v587
      %v589 = vpop.f32.mrf.mxu0
      %590 = vmatprep.mubr.bf16.mxu0 0
      %591 = vmatmul.mubr.bf16.gmra.mxu0 %v530
      %v592 = vpop.f32.mrf.mxu0
      %v593 = vadd.f32 %v499, %v592
      %v594 = vpop.f32.mrf.mxu0
      %v595 = vpop.f32.mrf.mxu0
      %v596 = vadd.f32 %v499, %v595
      %v597 = vpop.f32.mrf.mxu0
      %598 = vmatprep.mubr.bf16.mxu0 0
      %599 = vmatmul.mubr.bf16.gmra.mxu0 %v533
      %v600 = vpop.f32.mrf.mxu0
      %v601 = vadd.f32 %v499, %v600
      %v602 = vpop.f32.mrf.mxu0
      %v603 = vpop.f32.mrf.mxu0
      %v604 = vadd.f32 %v499, %v603
      %v605 = vpop.f32.mrf.mxu0
      %606 = vmatprep.mubr.bf16.mxu0 0
      %607 = vmatmul.mubr.bf16.gmra.mxu0 %v536
      %v608 = vpop.f32.mrf.mxu0
      %v609 = vadd.f32 %v499, %v608
      %v610 = vpop.f32.mrf.mxu0
      %v611 = vpop.f32.mrf.mxu0
      %v612 = vadd.f32 %v499, %v611
      %v613 = vpop.f32.mrf.mxu0
      %614 = vmatprep.mubr.bf16.mxu0 0
      %615 = vmatmul.mubr.bf16.gmra.mxu0 %v539
      %v616 = vpop.f32.mrf.mxu0
      %v617 = vadd.f32 %v499, %v616
      %v618 = vpop.f32.mrf.mxu0
      %v619 = vpop.f32.mrf.mxu0
      %v620 = vadd.f32 %v499, %v619
      %v621 = vpop.f32.mrf.mxu0
      %622 = vmatprep.mubr.bf16.mxu0 0
      %623 = vmatmul.mubr.bf16.gmra.mxu0 %v542
      %v624 = vpop.f32.mrf.mxu0
      %v625 = vadd.f32 %v499, %v624
      %v626 = vpop.f32.mrf.mxu0
      %v627 = vpop.f32.mrf.mxu0
      %v628 = vadd.f32 %v499, %v627
      %v629 = vpop.f32.mrf.mxu0
      %630 = vmatprep.mubr.bf16.mxu0 0
      %631 = vmatmul.mubr.bf16.gmra.mxu0 %v545
      %v632 = vpop.f32.mrf.mxu0
      %v633 = vadd.f32 %v499, %v632
      %v634 = vpop.f32.mrf.mxu0
      %v635 = vpop.f32.mrf.mxu0
      %v636 = vadd.f32 %v499, %v635
      %v637 = vpop.f32.mrf.mxu0
      %638 = vmatprep.mubr.bf16.mxu0 0
      %639 = vmatmul.mubr.bf16.gmra.mxu0 %v548
      %v640 = vpop.f32.mrf.mxu0
      %v641 = vadd.f32 %v499, %v640
      %v642 = vpop.f32.mrf.mxu0
      %v643 = vpop.f32.mrf.mxu0
      %v644 = vadd.f32 %v499, %v643
      %v645 = vpop.f32.mrf.mxu0
      %646 = vdwg.mxu0
      %vm647 = vcmask 261120
      %648 = vst.msk [vmem:[%s226] sm:$0xff] %vm647, %v585
      %649 = vst.msk [vmem:[%s226 + $0x8] sm:$0xff] %vm647, %v588
      %650 = vst.msk [vmem:[%s226 + $0x10] sm:$0xff] %vm647, %v593
      %651 = vst.msk [vmem:[%s226 + $0x18] sm:$0xff] %vm647, %v596
      %652 = vst.msk [vmem:[%s226 + $0x20] sm:$0xff] %vm647, %v601
      %653 = vst.msk [vmem:[%s226 + $0x28] sm:$0xff] %vm647, %v604
      %654 = vst.msk [vmem:[%s226 + $0x30] sm:$0xff] %vm647, %v609
      %655 = vst.msk [vmem:[%s226 + $0x38] sm:$0xff] %vm647, %v612
      %656 = vst.msk [vmem:[%s226 + $0x40] sm:$0xff] %vm647, %v617
      %657 = vst.msk [vmem:[%s226 + $0x48] sm:$0xff] %vm647, %v620
      %658 = vst.msk [vmem:[%s226 + $0x50] sm:$0xff] %vm647, %v625
      %659 = vst.msk [vmem:[%s226 + $0x58] sm:$0xff] %vm647, %v628
      %660 = vst.msk [vmem:[%s226 + $0x60] sm:$0xff] %vm647, %v633
      %661 = vst.msk [vmem:[%s226 + $0x68] sm:$0xff] %vm647, %v636
      %662 = vst.msk [vmem:[%s226 + $0x70] sm:$0xff] %vm647, %v641
      %663 = vst.msk [vmem:[%s226 + $0x78] sm:$0xff] %vm647, %v644
      %s664 = smul.u32 16, %s16
      %p665 = scmp.lt.s32.totalorder %s664, 63
      %s666 = scalar_select %p665, %s664, 63
      %s667 = smul.addr %s666, 8
      %s668 = scalar_lea.vmem %s5, %s667
      // Predicated region
      $region41: #{tpu_custom_call.1} parent=39 // pred_check
        %p669 = pneg %p144
      $region42: #{tpu_custom_call.1} parent=39 // pred_check_branch
        %671 = sbr.rel (%p669) target = $region44
      $region43: #{tpu_custom_call.1} parent=39 // pred_region
        %s672 = smul.u32 16, %s16
      $region44: #{tpu_custom_call.1} parent=39 // pred_fallthru
        _
    $region40: #{tpu_custom_call.1} parent=5 // pred_fallthru
      _
    %p673 = scmp.le.s32.totalorder 2, %s11
    // Predicated region
    $region45: #{tpu_custom_call.1} parent=5 // pred_check
      %p674 = pneg %p673
    $region46: #{tpu_custom_call.1} parent=5 // pred_check_branch
      %676 = sbr.rel (%p674) target = $region48
    $region47: #{tpu_custom_call.1} parent=5 // pred_region
      %s677 = ssub.s32 %s11, 2
      // Predicated region
      $region49: #{tpu_custom_call.1} parent=47 // pred_check
        %p678 = pneg %p150
      $region50: #{tpu_custom_call.1} parent=47 // pred_check_branch
        %680 = sbr.rel (%p678) target = $region52
      $region51: #{tpu_custom_call.1} parent=47 // pred_region
        %s681 = smul.u32 16, %s17
        %p682 = scmp.lt.s32.totalorder %s681, 63
        %s683 = scalar_select %p682, %s681, 63
        %s684 = smul.addr %s683, 8
        %s685 = scalar_lea.vmem %s5, %s684
      $region52: #{tpu_custom_call.1} parent=47 // pred_fallthru
        _
    $region48: #{tpu_custom_call.1} parent=5 // pred_fallthru
      _
  $region6: #{tpu_custom_call.1} parent=0 // loop_footer
    %s15 = sadd.s32 1, %s11
  $region7: #{tpu_custom_call.1} parent=0 // loop_footer_branch
    %10 = sbr.rel target = $region3
  $region8: #{tpu_custom_call.1} parent=0 // loop_exit
    _

</llo_original>
